<compile_context>
chip_gen: v7x
topology: tpu7x:2x2x1
jax: 0.10.0
libtpu: 0.0.40
codegen_flags: <defaults>
</compile_context>

<pallas_src>
import functools

import jax
import jax.numpy as jnp
from jax.experimental import pallas as pl
from jax.experimental.pallas import tpu as pltpu


def _tea_head_kernel(seq_len, x_ref, gamma_ref, beta_ref, w_ref, b_ref,
                     cls_ref, mean_ref):
    """Per-tile LayerNorm core + seq-sum accumulation; finalize on last seq tile."""
    s_idx = pl.program_id(1)

    @pl.when(s_idx == 0)
    def _init():
        mean_ref[...] = jnp.zeros_like(mean_ref)

    x = x_ref[...]                                              # [TB, TS, H] bf16/f32
    h = x.shape[-1]

    # --- single-pass moments: lane reductions with f32 accumulation ------------
    s1 = jnp.sum(x, axis=-1, keepdims=True, dtype=jnp.float32)       # [TB, TS, 1]
    s2 = jnp.sum(x * x, axis=-1, keepdims=True, dtype=jnp.float32)   # [TB, TS, 1]
    mu = s1 * (1.0 / h)                                              # [TB, TS, 1]
    var = s2 * (1.0 / h) - mu * mu                                   # [TB, TS, 1]
    inv = jax.lax.rsqrt(var + 1e-5)                                  # [TB, TS, 1] f32

    # --- MXU offload of normalize + seq-sum ------------------------------------
    # sum_s (x_s - mu_s) * inv_s  ==  (inv @ x)  -  sum_s(inv_s * mu_s)
    # x stays in its native (bf16) dtype as the big MXU operand.  The f32 scale
    # is split into hi/lo bf16 parts so the matvec keeps ~f32 accuracy while the
    # MXU (idle unit, huge slack) does the TS*H multiply + seq reduction.
    if x.dtype == jnp.float32:
        ws = jnp.einsum('bsq,bsh->bqh', inv, x,
                        preferred_element_type=jnp.float32)          # [TB, 1, H]
    else:
        inv_hi = inv.astype(x.dtype)
        inv_lo = (inv - inv_hi.astype(jnp.float32)).astype(x.dtype)
        ws = jnp.einsum('bsq,bsh->bqh', inv_hi, x,
                        preferred_element_type=jnp.float32)
        ws = ws + jnp.einsum('bsq,bsh->bqh', inv_lo, x,
                             preferred_element_type=jnp.float32)     # [TB, 1, H]

    corr = jnp.sum(inv * mu, axis=1, keepdims=True)                  # [TB, 1, 1]

    # Accumulate directly into the (VMEM-resident) mean output block.
    mean_ref[...] += ws - corr

    @pl.when(s_idx == pl.num_programs(1) - 1)
    def _finalize():
        gamma = gamma_ref[...].astype(jnp.float32)                   # [1, H]
        beta = beta_ref[...].astype(jnp.float32)                     # [1, H]
        # mean_s(gamma * xn + beta) == gamma * mean_s(xn) + beta  (exact).
        m = mean_ref[...] * (gamma * (1.0 / seq_len)) + beta         # [TB, 1, H]
        mean_ref[...] = m

        t = jnp.tanh(m)                                              # EUP
        w = w_ref[...].astype(jnp.float32)                           # [1, H]
        cls = jnp.sum(t * w, axis=-1, keepdims=True) + b_ref[0, 0]   # [TB, 1, 1]
        cls_ref[...] = cls.astype(cls_ref.dtype)


def chatglm_tea_head(last_hidden, gamma, beta, w, b, *, seq_tile=None,
                     batch_tile=1, input_buffers=2, vmem_limit_bytes=None):
    """LayerNorm(H) -> mean over seq -> tanh -> Linear(H,1) on TPU via Pallas.

    last_hidden: [B, S, H] (bf16 recommended), gamma/beta/w: [1, H], b: [1, 1].
    Returns (cls [B,1] f32, mean_normalized [B,H] f32).

    Tile-size guidance at real ChatGLM scale (H=4096..65024, bf16 activations)
    now that per-tile f32 temporaries are trimmed (one-pass moments + MXU path):
      v7x : seq_tile=512-1024 (4-8 MiB/tile) to amortize the ~0.35 us grid-step
            overhead against 3.2 TB/s HBM; optionally input_buffers=3.
      v6e : seq_tile=512 fits the 32 MiB scoped-VMEM default; or set
            vmem_limit_bytes ~= input_buffers*TB*TS*H*2 + a few TS*H*4 of temps.
      v5e : seq_tile=128-256 to stay under the 16 MiB scoped-VMEM default.
    """
    B, S, H = last_hidden.shape
    TB = int(batch_tile)
    if seq_tile is None:
        seq_tile = min(S, 512)
    TS = int(seq_tile)

    assert B % TB == 0, "batch_tile must divide B"
    assert S % TS == 0, "seq_tile must divide S"
    assert TS % 8 == 0 or TS == S, "seq_tile must be a multiple of 8 (or == S)"
    assert H % 128 == 0, "hidden size must be a multiple of 128 (lane width)"

    kernel = functools.partial(_tea_head_kernel, S)

    # Activation stream: tiled over (batch, seq); H stays whole (lane axis).
    act_spec_kwargs = {}
    if int(input_buffers) != 2:
        act_spec_kwargs["pipeline_mode"] = pl.Buffered(int(input_buffers))
    act_spec = pl.BlockSpec((TB, TS, H), lambda bb, ss: (bb, ss, 0),
                            **act_spec_kwargs)

    grid_spec = pltpu.PrefetchScalarGridSpec(
        num_scalar_prefetch=0,
        grid=(B // TB, S // TS),
        in_specs=[
            act_spec,
            # Small params: constant block index -> DMA'd once, not per step.
            pl.BlockSpec((1, H), lambda bb, ss: (0, 0)),      # gamma
            pl.BlockSpec((1, H), lambda bb, ss: (0, 0)),      # beta
            pl.BlockSpec((1, H), lambda bb, ss: (0, 0)),      # classifier weight
            # Scalar bias lives in SMEM.
            pl.BlockSpec(memory_space=pltpu.MemorySpace.SMEM),
        ],
        out_specs=(
            pl.BlockSpec((TB, 1, 1), lambda bb, ss: (bb, 0, 0)),  # cls
            pl.BlockSpec((TB, 1, H), lambda bb, ss: (bb, 0, 0)),  # mean (accumulator)
        ),
    )

    compiler_params = pltpu.CompilerParams(
        # batch is independent (shards across v7x's two TensorCores);
        # seq is the accumulation axis.
        dimension_semantics=("parallel", "arbitrary"),
        vmem_limit_bytes=vmem_limit_bytes,
    )

    cls3, mean3 = pl.pallas_call(
        kernel,
        out_shape=(jax.ShapeDtypeStruct((B, 1, 1), jnp.float32),
                   jax.ShapeDtypeStruct((B, 1, H), jnp.float32)),
        grid_spec=grid_spec,
        compiler_params=compiler_params,
    )(last_hidden, gamma, beta, w, b)

    return cls3.reshape(B, 1), mean3.reshape(B, H)


def reference_head(last_hidden, gamma, beta, w, b):
    mu = jnp.mean(last_hidden, axis=-1, keepdims=True)
    var = jnp.mean((last_hidden - mu) ** 2, axis=-1, keepdims=True)
    y = (last_hidden - mu) / jnp.sqrt(var + 1e-5) * gamma + beta
    m = jnp.mean(y, axis=1)
    cls = jnp.tanh(m) @ w.reshape(-1, 1) + b.reshape(1, 1)
    return cls, m


if __name__ == "__main__":
    # Small stand-in shapes (real ChatGLM: hidden_size=65024).
    B, S, H, VOCAB = 2, 32, 128, 64

    key = jax.random.PRNGKey(0)
    k_ids, k_emb, k_w = jax.random.split(key, 3)

    # Synthetic integer inputs matching the module's (input_ids, attention_mask).
    input_ids = jax.random.randint(k_ids, (B, S), 0, VOCAB, dtype=jnp.int32)
    attention_mask = jnp.ones((B, S), dtype=jnp.int32)

    # TODO(synk): the frozen ChatGLM + LoRA backbone (AutoModelForCausalLM + peft)
    # has no Pallas equivalent; a deterministic embedding lookup stands in to
    # produce last_hidden_state [B, S, H].
    emb_table = 0.02 * jax.random.normal(k_emb, (VOCAB, H), dtype=jnp.float32)
    last_hidden_f32 = emb_table[input_ids] * attention_mask[..., None].astype(jnp.float32)
    # HBM-bandwidth-bound head: ship activations as bf16, upcast inside the kernel.
    last_hidden = last_hidden_f32.astype(jnp.bfloat16)

    # Head parameters (LayerNorm gamma=1, beta=0; classifier ~N(0, 0.02), bias=0).
    gamma = jnp.ones((1, H), dtype=jnp.float32)
    beta = jnp.zeros((1, H), dtype=jnp.float32)
    w = 0.02 * jax.random.normal(k_w, (1, H), dtype=jnp.float32)
    b = jnp.zeros((1, 1), dtype=jnp.float32)

    # Reference on the same bf16-quantized activations (upcast to f32).
    cls_ref, mean_ref_ = reference_head(last_hidden.astype(jnp.float32),
                                        gamma, beta, w, b)

    # Config 1: multiple seq tiles per batch row -> exercises the accumulator path.
    cls_out, mean_out = chatglm_tea_head(last_hidden, gamma, beta, w, b,
                                         seq_tile=16, batch_tile=1)
    jax.block_until_ready((cls_out, mean_out))
    assert cls_out.shape == (B, 1) and mean_out.shape == (B, H)
    assert jnp.allclose(cls_out, cls_ref, atol=2e-3, rtol=2e-3)
    assert jnp.allclose(mean_out, mean_ref_, atol=2e-3, rtol=2e-3)

    # Config 2: batch tile > 1, single seq tile -> exercises the TB knob.
    cls_out2, mean_out2 = chatglm_tea_head(last_hidden, gamma, beta, w, b,
                                           seq_tile=S, batch_tile=2)
    jax.block_until_ready((cls_out2, mean_out2))
    assert jnp.allclose(cls_out2, cls_ref, atol=2e-3, rtol=2e-3)
    assert jnp.allclose(mean_out2, mean_ref_, atol=2e-3, rtol=2e-3)

    print("KERNEL_OK")
</pallas_src>

<mosaic_0001>
module attributes {stable_mosaic.version = 11 : i64} {
  func.func @_tea_head_kernel(%arg0: i32, %arg1: i32, %arg2: memref<1x16x128xbf16, #tpu.memory_space<vmem>>, %arg3: memref<1x128xf32, #tpu.memory_space<vmem>>, %arg4: memref<1x128xf32, #tpu.memory_space<vmem>>, %arg5: memref<1x128xf32, #tpu.memory_space<vmem>>, %arg6: memref<1x1xf32, #tpu.memory_space<smem>>, %arg7: memref<1x1x1xf32, #tpu.memory_space<vmem>>, %arg8: memref<1x1x128xf32, #tpu.memory_space<vmem>>) attributes {dimension_semantics = [#tpu.dimension_semantics<parallel>, #tpu.dimension_semantics<arbitrary>], iteration_bounds = array<i64: 2, 2>, scalar_prefetch = 0 : i64, scratch_operands = 0 : i64, tpu.core_type = #tpu.core_type<tc>, window_params = [{transform_indices = @transform_0, window_bounds = array<i64: 1, 16, 128>}, {pipeline_mode = #tpu.pipeline_mode<synchronous>, transform_indices = @transform_1, window_bounds = array<i64: 1, 128>}, {pipeline_mode = #tpu.pipeline_mode<synchronous>, transform_indices = @transform_2, window_bounds = array<i64: 1, 128>}, {pipeline_mode = #tpu.pipeline_mode<synchronous>, transform_indices = @transform_3, window_bounds = array<i64: 1, 128>}, {transform_indices = @transform_4, window_bounds = array<i64: 1, 1>}, {transform_indices = @transform_5, window_bounds = array<i64: 1, 1, 1>}, {transform_indices = @transform_6, window_bounds = array<i64: 1, 1, 128>}]} {
    %c0_i32 = arith.constant 0 : i32
    %0 = arith.cmpi eq, %arg1, %c0_i32 : i32
    %1 = arith.extui %0 : i1 to i32
    %c0_i32_0 = arith.constant 0 : i32
    %2 = arith.cmpi ne, %1, %c0_i32_0 : i32
    scf.if %2 {
      %cst_17 = arith.constant 0.000000e+00 : f32
      %38 = vector.broadcast %cst_17 : f32 to vector<1x1x128xf32>
      %c0_18 = arith.constant 0 : index
      %c0_19 = arith.constant 0 : index
      %c0_20 = arith.constant 0 : index
      %39 = vector.load %arg8[%c0_18, %c0_19, %c0_20] : memref<1x1x128xf32, #tpu.memory_space<vmem>>, vector<1x1x128xf32>
      tpu.vector_store %arg8[%c0_18, %c0_19, %c0_20], %38 {strides = array<i32>} : memref<1x1x128xf32, #tpu.memory_space<vmem>>, vector<1x1x128xf32>,
    } else {
    }
    %c0 = arith.constant 0 : index
    %c0_1 = arith.constant 0 : index
    %c0_2 = arith.constant 0 : index
    %3 = vector.load %arg2[%c0, %c0_1, %c0_2] : memref<1x16x128xbf16, #tpu.memory_space<vmem>>, vector<1x16x128xbf16>
    %4 = arith.extf %3 : vector<1x16x128xbf16> to vector<1x16x128xf32>
    %cst = arith.constant dense<0.000000e+00> : vector<1x16xf32>
    %5 = vector.multi_reduction <add>, %4, %cst [2] : vector<1x16x128xf32> to vector<1x16xf32>
    %6 = vector.shape_cast %5 : vector<1x16xf32> to vector<1x16x1xf32>
    %7 = arith.mulf %3, %3 : vector<1x16x128xbf16>
    %8 = arith.extf %7 : vector<1x16x128xbf16> to vector<1x16x128xf32>
    %cst_3 = arith.constant dense<0.000000e+00> : vector<1x16xf32>
    %9 = vector.multi_reduction <add>, %8, %cst_3 [2] : vector<1x16x128xf32> to vector<1x16xf32>
    %10 = vector.shape_cast %9 : vector<1x16xf32> to vector<1x16x1xf32>
    %cst_4 = arith.constant 7.812500e-03 : f32
    %11 = vector.broadcast %cst_4 : f32 to vector<1x16x1xf32>
    %12 = arith.mulf %6, %11 : vector<1x16x1xf32>
    %cst_5 = arith.constant 7.812500e-03 : f32
    %13 = vector.broadcast %cst_5 : f32 to vector<1x16x1xf32>
    %14 = arith.mulf %10, %13 : vector<1x16x1xf32>
    %15 = arith.mulf %12, %12 : vector<1x16x1xf32>
    %16 = arith.subf %14, %15 : vector<1x16x1xf32>
    %cst_6 = arith.constant 9.99999974E-6 : f32
    %17 = vector.broadcast %cst_6 : f32 to vector<1x16x1xf32>
    %18 = arith.addf %16, %17 : vector<1x16x1xf32>
    %19 = math.rsqrt %18 : vector<1x16x1xf32>
    %20 = arith.truncf %19 : vector<1x16x1xf32> to vector<1x16x1xbf16>
    %21 = arith.extf %20 : vector<1x16x1xbf16> to vector<1x16x1xf32>
    %22 = arith.subf %19, %21 : vector<1x16x1xf32>
    %23 = arith.truncf %22 : vector<1x16x1xf32> to vector<1x16x1xbf16>
    "tpu.trace_start"() <{level = 10 : i32, message = "bsq,bsh->bqh"}> : () -> ()
    %cst_7 = arith.constant dense<0.000000e+00> : vector<1x1x128xf32>
    %24 = tpu.matmul %20, %3, %cst_7 {dimension_numbers = #tpu.dot_dimension_numbers<[1], [1], [2], [2], [0, 0, 0, 2, 1, 2], [0], [0]>} : vector<1x16x1xbf16>, vector<1x16x128xbf16>, vector<1x1x128xf32> -> vector<1x1x128xf32>
    %cst_8 = arith.constant dense<0.000000e+00> : vector<1x1x128xf32>
    %25 = tpu.matmul %23, %3, %cst_8 {dimension_numbers = #tpu.dot_dimension_numbers<[1], [1], [2], [2], [0, 0, 0, 2, 1, 2], [0], [0]>} : vector<1x16x1xbf16>, vector<1x16x128xbf16>, vector<1x1x128xf32> -> vector<1x1x128xf32>
    "tpu.trace_stop"() : () -> ()
    %26 = arith.addf %24, %25 : vector<1x1x128xf32>
    %27 = arith.mulf %19, %12 : vector<1x16x1xf32>
    %cst_9 = arith.constant dense<0.000000e+00> : vector<1x1xf32>
    %28 = vector.multi_reduction <add>, %27, %cst_9 [1] : vector<1x16x1xf32> to vector<1x1xf32>
    %29 = vector.shape_cast %28 : vector<1x1xf32> to vector<1x1x1xf32>
    %c0_10 = arith.constant 0 : index
    %c0_11 = arith.constant 0 : index
    %c0_12 = arith.constant 0 : index
    %30 = vector.load %arg8[%c0_10, %c0_11, %c0_12] : memref<1x1x128xf32, #tpu.memory_space<vmem>>, vector<1x1x128xf32>
    %31 = vector.broadcast %29 : vector<1x1x1xf32> to vector<1x1x128xf32>
    %32 = arith.subf %26, %31 : vector<1x1x128xf32>
    %33 = arith.addf %30, %32 : vector<1x1x128xf32>
    %c0_13 = arith.constant 0 : index
    %c0_14 = arith.constant 0 : index
    %c0_15 = arith.constant 0 : index
    %34 = vector.load %arg8[%c0_13, %c0_14, %c0_15] : memref<1x1x128xf32, #tpu.memory_space<vmem>>, vector<1x1x128xf32>
    tpu.vector_store %arg8[%c0_13, %c0_14, %c0_15], %33 {strides = array<i32>} : memref<1x1x128xf32, #tpu.memory_space<vmem>>, vector<1x1x128xf32>,
    %c1_i32 = arith.constant 1 : i32
    %35 = arith.cmpi eq, %arg1, %c1_i32 : i32
    %36 = arith.extui %35 : i1 to i32
    %c0_i32_16 = arith.constant 0 : i32
    %37 = arith.cmpi ne, %36, %c0_i32_16 : i32
    scf.if %37 {
      %c0_17 = arith.constant 0 : index
      %c0_18 = arith.constant 0 : index
      %38 = vector.load %arg3[%c0_17, %c0_18] : memref<1x128xf32, #tpu.memory_space<vmem>>, vector<1x128xf32>
      %c0_19 = arith.constant 0 : index
      %c0_20 = arith.constant 0 : index
      %39 = vector.load %arg4[%c0_19, %c0_20] : memref<1x128xf32, #tpu.memory_space<vmem>>, vector<1x128xf32>
      %c0_21 = arith.constant 0 : index
      %c0_22 = arith.constant 0 : index
      %c0_23 = arith.constant 0 : index
      %40 = vector.load %arg8[%c0_21, %c0_22, %c0_23] : memref<1x1x128xf32, #tpu.memory_space<vmem>>, vector<1x1x128xf32>
      %cst_24 = arith.constant 3.125000e-02 : f32
      %41 = vector.broadcast %cst_24 : f32 to vector<1x128xf32>
      %42 = arith.mulf %38, %41 : vector<1x128xf32>
      %43 = vector.shape_cast %42 : vector<1x128xf32> to vector<1x1x128xf32>
      %44 = arith.mulf %40, %43 : vector<1x1x128xf32>
      %45 = vector.shape_cast %39 : vector<1x128xf32> to vector<1x1x128xf32>
      %46 = arith.addf %44, %45 : vector<1x1x128xf32>
      %c0_25 = arith.constant 0 : index
      %c0_26 = arith.constant 0 : index
      %c0_27 = arith.constant 0 : index
      %47 = vector.load %arg8[%c0_25, %c0_26, %c0_27] : memref<1x1x128xf32, #tpu.memory_space<vmem>>, vector<1x1x128xf32>
      tpu.vector_store %arg8[%c0_25, %c0_26, %c0_27], %46 {strides = array<i32>} : memref<1x1x128xf32, #tpu.memory_space<vmem>>, vector<1x1x128xf32>,
      %48 = math.tanh %46 : vector<1x1x128xf32>
      %c0_28 = arith.constant 0 : index
      %c0_29 = arith.constant 0 : index
      %49 = vector.load %arg5[%c0_28, %c0_29] : memref<1x128xf32, #tpu.memory_space<vmem>>, vector<1x128xf32>
      %50 = vector.shape_cast %49 : vector<1x128xf32> to vector<1x1x128xf32>
      %51 = arith.mulf %48, %50 : vector<1x1x128xf32>
      %cst_30 = arith.constant dense<0.000000e+00> : vector<1x1xf32>
      %52 = vector.multi_reduction <add>, %51, %cst_30 [2] : vector<1x1x128xf32> to vector<1x1xf32>
      %53 = vector.shape_cast %52 : vector<1x1xf32> to vector<1x1x1xf32>
      %c0_31 = arith.constant 0 : index
      %c0_32 = arith.constant 0 : index
      %54 = memref.load %arg6[%c0_31, %c0_32] : memref<1x1xf32, #tpu.memory_space<smem>>
      %55 = vector.broadcast %54 : f32 to vector<1x1x1xf32>
      %56 = arith.addf %53, %55 : vector<1x1x1xf32>
      %c0_33 = arith.constant 0 : index
      %c0_34 = arith.constant 0 : index
      %c0_35 = arith.constant 0 : index
      %57 = vector.load %arg7[%c0_33, %c0_34, %c0_35] : memref<1x1x1xf32, #tpu.memory_space<vmem>>, vector<1x1x1xf32>
      tpu.vector_store %arg7[%c0_33, %c0_34, %c0_35], %56 {strides = array<i32>} : memref<1x1x1xf32, #tpu.memory_space<vmem>>, vector<1x1x1xf32>,
    } else {
    }
    return
  }
  func.func @transform_0(%arg0: i32, %arg1: i32) -> (i32, i32, i32) {
    %c0_i32 = arith.constant 0 : i32
    %c0_i32_0 = arith.constant 0 : i32
    return %arg0, %arg1, %c0_i32 : i32, i32, i32
  }
  func.func @transform_1(%arg0: i32, %arg1: i32) -> (i32, i32) {
    %c0_i32 = arith.constant 0 : i32
    %c0_i32_0 = arith.constant 0 : i32
    %c0_i32_1 = arith.constant 0 : i32
    return %c0_i32, %c0_i32_0 : i32, i32
  }
  func.func @transform_2(%arg0: i32, %arg1: i32) -> (i32, i32) {
    %c0_i32 = arith.constant 0 : i32
    %c0_i32_0 = arith.constant 0 : i32
    %c0_i32_1 = arith.constant 0 : i32
    return %c0_i32, %c0_i32_0 : i32, i32
  }
  func.func @transform_3(%arg0: i32, %arg1: i32) -> (i32, i32) {
    %c0_i32 = arith.constant 0 : i32
    %c0_i32_0 = arith.constant 0 : i32
    %c0_i32_1 = arith.constant 0 : i32
    return %c0_i32, %c0_i32_0 : i32, i32
  }
  func.func @transform_4(%arg0: i32, %arg1: i32) -> (i32, i32) {
    %c0_i32 = arith.constant 0 : i32
    %c0_i32_0 = arith.constant 0 : i32
    %c0_i32_1 = arith.constant 0 : i32
    return %c0_i32, %c0_i32_0 : i32, i32
  }
  func.func @transform_5(%arg0: i32, %arg1: i32) -> (i32, i32, i32) {
    %c0_i32 = arith.constant 0 : i32
    %c0_i32_0 = arith.constant 0 : i32
    %c0_i32_1 = arith.constant 0 : i32
    return %arg0, %c0_i32, %c0_i32_0 : i32, i32, i32
  }
  func.func @transform_6(%arg0: i32, %arg1: i32) -> (i32, i32, i32) {
    %c0_i32 = arith.constant 0 : i32
    %c0_i32_0 = arith.constant 0 : i32
    %c0_i32_1 = arith.constant 0 : i32
    return %arg0, %c0_i32, %c0_i32_0 : i32, i32, i32
  }
}

</mosaic_0001>

<llo_original>
// kernel: tpu_custom_call.1
$region0: #{tpu_custom_call.1}
  #allocation0 [shape = 'u32[]', space=smem, size = 0x4, offset = 0x4, fixed_abs, tag = 'smem constant byte address 0x4 - core index']
  #allocation1 [shape = 'u32[144,128]{1,0:T(1,128)}', space=vmem, size = 0x12000, scoped, tag = 'internal scratch']
  #allocation2 [shape = 'f32[1,1]{1,0:T(1,128)S(6)}', space=smem, size = 0x200, scoped, tag = 'scoped memory for tpu_custom_call.1']
  %s0 = inlined_call_operand.hbm [shape: bf16[2,32,128], index: 0, kind: input, shape index: {}]
  %s1 = inlined_call_operand.vmem [shape: f32[1,128], index: 1, kind: input, shape index: {}]
  %s2 = inlined_call_operand.vmem [shape: f32[1,128], index: 2, kind: input, shape index: {}]
  %s3 = inlined_call_operand.vmem [shape: f32[1,128], index: 3, kind: input, shape index: {}]
  %s4 = inlined_call_operand.<no memory space> [shape: f32[1,1], index: 4, kind: input, shape index: {}]
  %s5 = inlined_call_operand.vmem [shape: f32[2,1,1], index: 5, kind: output, shape index: {0}]
  %s6 = inlined_call_operand.hbm [shape: f32[2,1,128], index: 6, kind: output, shape index: {1}]
  %7 = xla_tuple %s5, %s6
  %s8 = sld [smem:[#allocation0]]
  $region73: #{tpu_custom_call.1} parent=0
    _
  %s10 = ssub.s32 1, %s8
  %s11 = scalar_select 0, %s10, %s8
  %12 = sst [smem:[#allocation2]] %s4
  $region1: #{tpu_custom_call.1} parent=0
    #allocation3 [shape = 'u8[8192]{0}', space=vmem, size = 0x2000, scoped, tag = 'input window, operand 0']
    #allocation4 [shape = 's32[2]{0}', space=sflag, size = 0x8, scoped, tag = 'scoped memory for tpu_custom_call.1']
    #allocation5 [shape = 's32[2]{0}', space=sflag, size = 0x8, scoped, tag = 'scoped memory for tpu_custom_call.1']
    #allocation6 [shape = 'u8[1024]{0}', space=vmem, size = 0x400, scoped, tag = 'output window, operand 1']
    %13 = vsyncpa [#allocation4], 0
    %s14 = scalar_lea.sflag [#allocation4], 1
    %15 = vsyncpa %s14, 0
    %16 = vsyncpa [#allocation5], 0
    %s17 = scalar_lea.sflag [#allocation5], 1
    %18 = vsyncpa %s17, 0
    loop: start=0, step=1, limit=6
    $region2: #{tpu_custom_call.1} parent=1 // loop_pre_header
      _
    $region3: #{tpu_custom_call.1} parent=1 // loop_header
      %s20 = sphi 0, %s24
      %p21 = scmp.ge.s32.totalorder %s20, 6
      %s27 = sphi 0, %s39
      %s28 = sphi 0, %s35
      %s29 = sphi 0, %s27
      %s30 = sphi 0, %s28
      %s31 = sphi 0, %s29
      %s32 = sphi 0, %s30
      %s44 = sphi 0, %s46
      %s47 = sphi 0, %s44
      %s48 = sphi 0, %s47
      %s64 = sphi 0, %s48
      %s68 = sphi 0, %s68
      %s70 = sphi 0, %s68
      %s71 = sphi 0, %s70
      %s85 = sphi 0, %s71
      %s89 = sphi 0, %s89
      %s91 = sphi 0, %s89
      %s92 = sphi 0, %s91
      %s106 = sphi 0, %s92
      %s110 = sphi 0, %s110
      %s112 = sphi 0, %s110
      %s113 = sphi 0, %s112
      %s127 = sphi 0, %s113
      %s131 = sphi 0, %s131
      %s133 = sphi 0, %s131
      %s134 = sphi 0, %s133
      %s148 = sphi 0, %s134
      %s154 = sphi 0, %s156
      %s157 = sphi 0, %s154
      %s158 = sphi 0, %s157
      %s174 = sphi 0, %s158
      %s180 = sphi 0, %s182
      %s183 = sphi 0, %s180
      %s184 = sphi 0, %s183
      %s200 = sphi 0, %s184
    $region4: #{tpu_custom_call.1} parent=1 // loop_header_branch
      %23 = sbr.rel (%p21) target = $region8
    $region5: #{tpu_custom_call.1} parent=1 // loop_body
      %s25 = ssub.s32 %s20, 1
      %s26 = ssub.s32 %s20, 2
      %s33 = sadd.s32 1, %s28
      %p34 = scmp.ge.s32.totalorder %s33, 2
      %s35 = scalar_select %p34, 0, %s33
      %s36 = sadd.s32 1, %s27
      %s37 = scalar_select %p34, %s36, %s27
      %p38 = scmp.ge.s32.totalorder %s37, 2
      %s39 = scalar_select %p38, 0, %s37
      %s40 = ssub.s32 %s27, %s39
      %s41 = ssub.s32 %s28, %s35
      %s42 = sor.u32 %s40, %s41
      %p43 = scmp.eq.s32.totalorder %s42, 0
      %s45 = sadd.s32 %s44, 1
      %s46 = scalar_select %p43, %s44, %s45
      %p49 = pneg %p43
      %p50 = scmp.eq.s32.totalorder %s20, 3
      %p51 = por %p49, %p50
      %p52 = scmp.ne.s32.totalorder %s44, %s47
      %p53 = scmp.eq.s32.totalorder %s20, 0
      %p54 = por %p52, %p53
      %p55 = scmp.ne.s32.totalorder %s44, %s47
      %p56 = scmp.eq.s32.totalorder %s25, 3
      %p57 = por %p55, %p56
      %p58 = scmp.ne.s32.totalorder %s47, %s48
      %p59 = scmp.eq.s32.totalorder %s25, 0
      %p60 = por %p58, %p59
      %p61 = scmp.ne.s32.totalorder %s47, %s48
      %p62 = scmp.eq.s32.totalorder %s26, 3
      %p63 = por %p61, %p62
      %p65 = scmp.ne.s32.totalorder %s48, %s64
      %p66 = scmp.eq.s32.totalorder %s26, 0
      %p67 = por %p65, %p66
      %s69 = sadd.s32 %s68, 1
      %p72 = scmp.eq.s32.totalorder %s20, 3
      %p73 = scmp.ne.s32.totalorder %s68, %s70
      %p74 = scmp.eq.s32.totalorder %s20, 0
      %p75 = por %p73, %p74
      %p76 = scmp.ne.s32.totalorder %s68, %s70
      %p77 = scmp.eq.s32.totalorder %s25, 3
      %p78 = por %p76, %p77
      %p79 = scmp.ne.s32.totalorder %s70, %s71
      %p80 = scmp.eq.s32.totalorder %s25, 0
      %p81 = por %p79, %p80
      %p82 = scmp.ne.s32.totalorder %s70, %s71
      %p83 = scmp.eq.s32.totalorder %s26, 3
      %p84 = por %p82, %p83
      %p86 = scmp.ne.s32.totalorder %s71, %s85
      %p87 = scmp.eq.s32.totalorder %s26, 0
      %p88 = por %p86, %p87
      %s90 = sadd.s32 %s89, 1
      %p93 = scmp.eq.s32.totalorder %s20, 3
      %p94 = scmp.ne.s32.totalorder %s89, %s91
      %p95 = scmp.eq.s32.totalorder %s20, 0
      %p96 = por %p94, %p95
      %p97 = scmp.ne.s32.totalorder %s89, %s91
      %p98 = scmp.eq.s32.totalorder %s25, 3
      %p99 = por %p97, %p98
      %p100 = scmp.ne.s32.totalorder %s91, %s92
      %p101 = scmp.eq.s32.totalorder %s25, 0
      %p102 = por %p100, %p101
      %p103 = scmp.ne.s32.totalorder %s91, %s92
      %p104 = scmp.eq.s32.totalorder %s26, 3
      %p105 = por %p103, %p104
      %p107 = scmp.ne.s32.totalorder %s92, %s106
      %p108 = scmp.eq.s32.totalorder %s26, 0
      %p109 = por %p107, %p108
      %s111 = sadd.s32 %s110, 1
      %p114 = scmp.eq.s32.totalorder %s20, 3
      %p115 = scmp.ne.s32.totalorder %s110, %s112
      %p116 = scmp.eq.s32.totalorder %s20, 0
      %p117 = por %p115, %p116
      %p118 = scmp.ne.s32.totalorder %s110, %s112
      %p119 = scmp.eq.s32.totalorder %s25, 3
      %p120 = por %p118, %p119
      %p121 = scmp.ne.s32.totalorder %s112, %s113
      %p122 = scmp.eq.s32.totalorder %s25, 0
      %p123 = por %p121, %p122
      %p124 = scmp.ne.s32.totalorder %s112, %s113
      %p125 = scmp.eq.s32.totalorder %s26, 3
      %p126 = por %p124, %p125
      %p128 = scmp.ne.s32.totalorder %s113, %s127
      %p129 = scmp.eq.s32.totalorder %s26, 0
      %p130 = por %p128, %p129
      %s132 = sadd.s32 %s131, 1
      %p135 = scmp.eq.s32.totalorder %s20, 3
      %p136 = scmp.ne.s32.totalorder %s131, %s133
      %p137 = scmp.eq.s32.totalorder %s20, 0
      %p138 = por %p136, %p137
      %p139 = scmp.ne.s32.totalorder %s131, %s133
      %p140 = scmp.eq.s32.totalorder %s25, 3
      %p141 = por %p139, %p140
      %p142 = scmp.ne.s32.totalorder %s133, %s134
      %p143 = scmp.eq.s32.totalorder %s25, 0
      %p144 = por %p142, %p143
      %p145 = scmp.ne.s32.totalorder %s133, %s134
      %p146 = scmp.eq.s32.totalorder %s26, 3
      %p147 = por %p145, %p146
      %p149 = scmp.ne.s32.totalorder %s134, %s148
      %p150 = scmp.eq.s32.totalorder %s26, 0
      %p151 = por %p149, %p150
      %s152 = ssub.s32 %s27, %s39
      %p153 = scmp.eq.s32.totalorder %s152, 0
      %s155 = sadd.s32 %s154, 1
      %s156 = scalar_select %p153, %s154, %s155
      %p159 = pneg %p153
      %p160 = scmp.eq.s32.totalorder %s20, 3
      %p161 = por %p159, %p160
      %p162 = scmp.ne.s32.totalorder %s154, %s157
      %p163 = scmp.eq.s32.totalorder %s20, 0
      %p164 = por %p162, %p163
      %p165 = scmp.ne.s32.totalorder %s154, %s157
      %p166 = scmp.eq.s32.totalorder %s25, 3
      %p167 = por %p165, %p166
      %p168 = scmp.ne.s32.totalorder %s157, %s158
      %p169 = scmp.eq.s32.totalorder %s25, 0
      %p170 = por %p168, %p169
      %p171 = scmp.ne.s32.totalorder %s157, %s158
      %p172 = scmp.eq.s32.totalorder %s26, 3
      %p173 = por %p171, %p172
      %p175 = scmp.ne.s32.totalorder %s158, %s174
      %p176 = scmp.eq.s32.totalorder %s26, 0
      %p177 = por %p175, %p176
      %s178 = ssub.s32 %s27, %s39
      %p179 = scmp.eq.s32.totalorder %s178, 0
      %s181 = sadd.s32 %s180, 1
      %s182 = scalar_select %p179, %s180, %s181
      %p185 = pneg %p179
      %p186 = scmp.eq.s32.totalorder %s20, 3
      %p187 = por %p185, %p186
      %p188 = scmp.ne.s32.totalorder %s180, %s183
      %p189 = scmp.eq.s32.totalorder %s20, 0
      %p190 = por %p188, %p189
      %p191 = scmp.ne.s32.totalorder %s180, %s183
      %p192 = scmp.eq.s32.totalorder %s25, 3
      %p193 = por %p191, %p192
      %p194 = scmp.ne.s32.totalorder %s183, %s184
      %p195 = scmp.eq.s32.totalorder %s25, 0
      %p196 = por %p194, %p195
      %p197 = scmp.ne.s32.totalorder %s183, %s184
      %p198 = scmp.eq.s32.totalorder %s26, 3
      %p199 = por %p197, %p198
      %p201 = scmp.ne.s32.totalorder %s184, %s200
      %p202 = scmp.eq.s32.totalorder %s26, 0
      %p203 = por %p201, %p202
      %p204 = scmp.le.s32.totalorder 1, %s20
      %p205 = scmp.lt.s32.totalorder %s20, 5
      %p206 = pnand %p204, %p205
      %p207 = pneg %p206
      // Predicated region
      $region9: #{tpu_custom_call.1} parent=5 // pred_check
        _
      $region10: #{tpu_custom_call.1} parent=5 // pred_check_branch
        %209 = sbr.rel (%p206) target = $region12
      $region11: #{tpu_custom_call.1} parent=5 // pred_region
        %s210 = ssub.s32 %s20, 1
        // Predicated region
        $region13: #{tpu_custom_call.1} parent=11 // pred_check
          %p211 = pneg %p81
        $region14: #{tpu_custom_call.1} parent=11 // pred_check_branch
          %213 = sbr.rel (%p211) target = $region16
        $region15: #{tpu_custom_call.1} parent=11 // pred_region
          _
        $region16: #{tpu_custom_call.1} parent=11 // pred_fallthru
          _
        // Predicated region
        $region17: #{tpu_custom_call.1} parent=11 // pred_check
          %p214 = pneg %p102
        $region18: #{tpu_custom_call.1} parent=11 // pred_check_branch
          %216 = sbr.rel (%p214) target = $region20
        $region19: #{tpu_custom_call.1} parent=11 // pred_region
          _
        $region20: #{tpu_custom_call.1} parent=11 // pred_fallthru
          _
        // Predicated region
        $region21: #{tpu_custom_call.1} parent=11 // pred_check
          %p217 = pneg %p123
        $region22: #{tpu_custom_call.1} parent=11 // pred_check_branch
          %219 = sbr.rel (%p217) target = $region24
        $region23: #{tpu_custom_call.1} parent=11 // pred_region
          _
        $region24: #{tpu_custom_call.1} parent=11 // pred_fallthru
          _
        // Predicated region
        $region25: #{tpu_custom_call.1} parent=11 // pred_check
          %p220 = pneg %p144
        $region26: #{tpu_custom_call.1} parent=11 // pred_check_branch
          %222 = sbr.rel (%p220) target = $region28
        $region27: #{tpu_custom_call.1} parent=11 // pred_region
          _
        $region28: #{tpu_custom_call.1} parent=11 // pred_fallthru
          _
      $region12: #{tpu_custom_call.1} parent=5 // pred_fallthru
        _
      %p223 = scmp.lt.s32.totalorder %s20, 4
      // Predicated region
      $region29: #{tpu_custom_call.1} parent=5 // pred_check
        %p224 = pneg %p223
      $region30: #{tpu_custom_call.1} parent=5 // pred_check_branch
        %226 = sbr.rel (%p224) target = $region32
      $region31: #{tpu_custom_call.1} parent=5 // pred_region
        // Predicated region
        $region33: #{tpu_custom_call.1} parent=31 // pred_check
          %p227 = pneg %p54
        $region34: #{tpu_custom_call.1} parent=31 // pred_check_branch
          %229 = sbr.rel (%p227) target = $region36
        $region35: #{tpu_custom_call.1} parent=31 // pred_region
          %s230 = sand.u32 %s44, 1
          %s231 = scalar_lea.sflag [#allocation4], %s230
          %s232 = sand.u32 %s44, 1
          %s233 = smul.addr %s232, 8
          %s234 = scalar_lea.vmem [#allocation3], %s233
          %s235 = smul.u32 2, %s28
          %s237 = ssub.s32 128, 128
          %238 = vsyncadd %s231, %s237
          %s239 = smul.addr %s27, 4
          %s240 = sadd.s32 %s235, %s239
          %s241 = smul.addr %s240, 64
          %s242 = scalar_lea.hbm %s0, %s241
          %s243 = sshll.u32 %s234, 4
          %s244 = int_to_ptr.vmem [resolvable:$true] %s243
          %249 = dma.hbm_to_vmem [thread:$0]  %s242, 128, %s244, %s231, 64, 64, 4
        $region36: #{tpu_custom_call.1} parent=31 // pred_fallthru
          _
      $region32: #{tpu_custom_call.1} parent=5 // pred_fallthru
        _
      %p250 = scmp.le.s32.totalorder 1, %s20
      %p251 = scmp.lt.s32.totalorder %s20, 5
      %p252 = pnand %p250, %p251
      %p253 = pneg %p252
      // Predicated region
      $region37: #{tpu_custom_call.1} parent=5 // pred_check
        _
      $region38: #{tpu_custom_call.1} parent=5 // pred_check_branch
        %255 = sbr.rel (%p252) target = $region40
      $region39: #{tpu_custom_call.1} parent=5 // pred_region
        %s256 = ssub.s32 %s20, 1
        %s257 = sand.u32 %s47, 1
        %s258 = scalar_lea.sflag [#allocation4], %s257
        %s259 = sand.u32 %s47, 1
        %s260 = smul.addr %s259, 8
        %s261 = scalar_lea.vmem [#allocation3], %s260
        // Predicated region
        $region41: #{tpu_custom_call.1} parent=39 // pred_check
          %p262 = pneg %p60
        $region42: #{tpu_custom_call.1} parent=39 // pred_check_branch
          %264 = sbr.rel (%p262) target = $region44
        $region43: #{tpu_custom_call.1} parent=39 // pred_region
          %265 = dma.done %s258, 128
        $region44: #{tpu_custom_call.1} parent=39 // pred_fallthru
          _
        %s266 = sand.u32 %s47, 1
        %s267 = scalar_lea.sflag [#allocation4], %s266
        %s268 = sand.u32 %s47, 1
        %s269 = smul.addr %s268, 8
        %s270 = scalar_lea.vmem [#allocation3], %s269
        %p271 = pneg %p60
        %p272 = pneg %p57
        %p273 = pneg %p81
        %p274 = pneg %p78
        %p275 = pneg %p102
        %p276 = pneg %p99
        %p277 = pneg %p123
        %p278 = pneg %p120
        %p279 = pneg %p144
        %p280 = pneg %p141
        %p281 = pneg %p170
        %p282 = pneg %p167
        %p283 = scmp.lt.s32.totalorder %s29, 1
        %s284 = scalar_select %p283, %s29, 1
        %s285 = scalar_lea.vmem %s5, %s284
        %p286 = pneg %p196
        %p287 = pneg %p193
        %s288 = sand.u32 %s183, 1
        %s289 = scalar_lea.sflag [#allocation5], %s288
        %s290 = sand.u32 %s183, 1
        %s291 = scalar_lea.vmem [#allocation6], %s290
        %s292 = smul.u32 2, %s30
        %p293 = scmp.lt.s32.totalorder %s29, 1
        %s294 = scalar_select %p293, %s29, 1
        %s295 = scalar_lea.vmem %s5, %s294
        %p297 = scmp.eq.s32.totalorder %s30, 0
        // Predicated region
        $region45: #{tpu_custom_call.1} parent=39 // pred_check
          %p298 = pneg %p297
        $region46: #{tpu_custom_call.1} parent=39 // pred_check_branch
          %300 = sbr.rel (%p298) target = $region48
        $region47: #{tpu_custom_call.1} parent=39 // pred_region
          %301 = vst [vmem:[%s291] sm:$0x1] 0.0
        $region48: #{tpu_custom_call.1} parent=39 // pred_fallthru
          _
        %v302 = vld [vmem:[%s261] sm:$0xf]
        %v303 = vld [vmem:[%s261 + $0x4] sm:$0xf]
        %v304 = vunpack.c.l.bf16 %v302
        %v305 = vunpack.c.l.bf16 %v303
        %306 = vadd.xlane.f32.xlu0 %v304
        %v307 = vpop.xlane.xlu0 %306
        %308 = vadd.xlane.f32.xlu0 %v305
        %v309 = vpop.xlane.xlu0 %308
        %v310 = vmul.bf16 %v302, %v302
        %v311 = vmul.bf16 %v303, %v303
        %v312 = vunpack.c.l.bf16 %v310
        %v313 = vunpack.c.l.bf16 %v311
        %314 = vadd.xlane.f32.xlu0 %v312
        %v315 = vpop.xlane.xlu0 %314
        %316 = vadd.xlane.f32.xlu0 %v313
        %v317 = vpop.xlane.xlu0 %316
        %v318 = vmul.f32 %v307, 0.0078125
        %v319 = vmul.f32 %v309, 0.0078125
        %v320 = vmul.f32 %v315, 0.0078125
        %v321 = vmul.f32 %v317, 0.0078125
        %v322 = vmul.f32 %v318, %v318
        %v323 = vmul.f32 %v319, %v319
        %v324 = vsub.f32 %v320, %v322
        %v325 = vsub.f32 %v321, %v323
        %v326 = vadd.f32 %v324, 1e-05
        %v327 = vadd.f32 %v325, 1e-05
        %v328 = vrsqrt.pop %v326
        %v329 = vrsqrt.pop %v327
        %v330 = vpack.c.bf16 %v329, %v328
        %v331 = vunpack.c.l.bf16 %v330
        %v332 = vunpack.c.h.bf16 %v330
        %v333 = vsub.f32 %v328, %v331
        %v334 = vsub.f32 %v329, %v332
        %v335 = vpack.c.bf16 %v334, %v333
        %336 = vxpose.xlu0.c.b16.start [1/8] %v335, 128
        %337 = vxpose.xlu0.c.b16.cont [2/8] 0, 128
        %338 = vxpose.xlu0.c.b16.cont [3/8] 0, 128
        %339 = vxpose.xlu0.c.b16.cont [4/8] 0, 128
        %340 = vxpose.xlu0.c.b16.cont [5/8] 0, 128
        %341 = vxpose.xlu0.c.b16.cont [6/8] 0, 128
        %342 = vxpose.xlu0.c.b16.cont [7/8] 0, 128
        %343 = vxpose.xlu0.c.b16.end [8/8] 0, 128
        %v344 = vpop.trf.xlu0
        %v345 = vpop.trf.xlu0
        %v346 = vpop.trf.xlu0
        %v347 = vpop.trf.xlu0
        %v348 = vpop.trf.xlu0
        %v349 = vpop.trf.xlu0
        %v350 = vpop.trf.xlu0
        %v351 = vpop.trf.xlu0
        %v354 = vunpack.c.l.b16 %v302
        %v355 = vunpack.c.l.b16 %v303
        %v356 = vpack.c.b16 %v355, %v354
        %vm358 = vcmask 130048
        %v360 = vsel %vm358, %v344, 0
        %362 = vmatprep.subr.bf16.mxu0 0
        %363 = vmatpush1.bf16.msra.mxu0 %v356
        %364 = vmatprep.subr.bf16.mxu0 0
        %365 = vmatpush1.bf16.msra.mxu0 0
        %366 = vmatprep.subr.bf16.mxu0 0
        %367 = vmatpush1.bf16.msra.mxu0 0
        %368 = vmatprep.subr.bf16.mxu0 0
        %369 = vmatpush1.bf16.msra.mxu0 0
        %370 = vmatprep.subr.bf16.mxu0 0
        %371 = vmatpush1.bf16.msra.mxu0 0
        %372 = vmatprep.subr.bf16.mxu0 0
        %373 = vmatpush1.bf16.msra.mxu0 0
        %374 = vmatprep.subr.bf16.mxu0 0
        %375 = vmatpush1.bf16.msra.mxu0 0
        %376 = vmatprep.subr.bf16.mxu0 0
        %377 = vmatpush1.bf16.msra.mxu0 0
        %378 = vmatprep.subr.bf16.mxu0 0
        %379 = vmatpush1.bf16.msra.mxu0 0
        %380 = vmatprep.subr.bf16.mxu0 0
        %381 = vmatpush1.bf16.msra.mxu0 0
        %382 = vmatprep.subr.bf16.mxu0 0
        %383 = vmatpush1.bf16.msra.mxu0 0
        %384 = vmatprep.subr.bf16.mxu0 0
        %385 = vmatpush1.bf16.msra.mxu0 0
        %386 = vmatprep.subr.bf16.mxu0 0
        %387 = vmatpush1.bf16.msra.mxu0 0
        %388 = vmatprep.subr.bf16.mxu0 0
        %389 = vmatpush1.bf16.msra.mxu0 0
        %390 = vmatprep.subr.bf16.mxu0 0
        %391 = vmatpush1.bf16.msra.mxu0 0
        %392 = vmatprep.subr.bf16.mxu0 0
        %393 = vmatpush1.bf16.msra.mxu0 0
        %394 = vmatprep.mubr.bf16.mxu0 0
        %395 = vmatmul.mubr.bf16.gmra.mrb[0].mxu0 %v360
        %v396 = vpop.f32.mrb[0].mxu0
        %v397 = vadd.f32 0.0, %v396
        %v398 = vpop.f32.mrb[0].mxu0
        %v399 = vpop.f32.mrb[0].mxu0
        %v400 = vpop.f32.mrb[0].mxu0
        %401 = vdwg.mxu0
        %402 = vxpose.xlu0.c.b16.start [1/8] %v330, 128
        %403 = vxpose.xlu0.c.b16.cont [2/8] 0, 128
        %404 = vxpose.xlu0.c.b16.cont [3/8] 0, 128
        %405 = vxpose.xlu0.c.b16.cont [4/8] 0, 128
        %406 = vxpose.xlu0.c.b16.cont [5/8] 0, 128
        %407 = vxpose.xlu0.c.b16.cont [6/8] 0, 128
        %408 = vxpose.xlu0.c.b16.cont [7/8] 0, 128
        %409 = vxpose.xlu0.c.b16.end [8/8] 0, 128
        %v410 = vpop.trf.xlu0
        %v411 = vpop.trf.xlu0
        %v412 = vpop.trf.xlu0
        %v413 = vpop.trf.xlu0
        %v414 = vpop.trf.xlu0
        %v415 = vpop.trf.xlu0
        %v416 = vpop.trf.xlu0
        %v417 = vpop.trf.xlu0
        %v419 = vsel %vm358, %v410, 0
        %421 = vmatprep.subr.bf16.mxu0 0
        %422 = vmatpush1.bf16.msra.mxu0 %v356
        %423 = vmatprep.subr.bf16.mxu0 0
        %424 = vmatpush1.bf16.msra.mxu0 0
        %425 = vmatprep.subr.bf16.mxu0 0
        %426 = vmatpush1.bf16.msra.mxu0 0
        %427 = vmatprep.subr.bf16.mxu0 0
        %428 = vmatpush1.bf16.msra.mxu0 0
        %429 = vmatprep.subr.bf16.mxu0 0
        %430 = vmatpush1.bf16.msra.mxu0 0
        %431 = vmatprep.subr.bf16.mxu0 0
        %432 = vmatpush1.bf16.msra.mxu0 0
        %433 = vmatprep.subr.bf16.mxu0 0
        %434 = vmatpush1.bf16.msra.mxu0 0
        %435 = vmatprep.subr.bf16.mxu0 0
        %436 = vmatpush1.bf16.msra.mxu0 0
        %437 = vmatprep.subr.bf16.mxu0 0
        %438 = vmatpush1.bf16.msra.mxu0 0
        %439 = vmatprep.subr.bf16.mxu0 0
        %440 = vmatpush1.bf16.msra.mxu0 0
        %441 = vmatprep.subr.bf16.mxu0 0
        %442 = vmatpush1.bf16.msra.mxu0 0
        %443 = vmatprep.subr.bf16.mxu0 0
        %444 = vmatpush1.bf16.msra.mxu0 0
        %445 = vmatprep.subr.bf16.mxu0 0
        %446 = vmatpush1.bf16.msra.mxu0 0
        %447 = vmatprep.subr.bf16.mxu0 0
        %448 = vmatpush1.bf16.msra.mxu0 0
        %449 = vmatprep.subr.bf16.mxu0 0
        %450 = vmatpush1.bf16.msra.mxu0 0
        %451 = vmatprep.subr.bf16.mxu0 0
        %452 = vmatpush1.bf16.msra.mxu0 0
        %453 = vmatprep.mubr.bf16.mxu0 0
        %454 = vmatmul.mubr.bf16.gmra.mrb[0].mxu0 %v419
        %v455 = vpop.f32.mrb[0].mxu0
        %v456 = vadd.f32 %v397, %v455
        %v457 = vpop.f32.mrb[0].mxu0
        %v458 = vpop.f32.mrb[0].mxu0
        %v459 = vpop.f32.mrb[0].mxu0
        %460 = vdwg.mxu0
        %v461 = vmul.f32 %v328, %v318
        %v462 = vmul.f32 %v329, %v319
        %v463 = vadd.f32 %v461, %v462
        %v464 = vrot.slane %v463, 4
        %v465 = vadd.f32 %v463, %v464
        %v466 = vrot.slane %v465, 2
        %v467 = vadd.f32 %v465, %v466
        %v468 = vrot.slane %v467, 1
        %v469 = vadd.f32 %v467, %v468
        %v470 = vld [vmem:[%s291] sm:$0x1]
        %v471 = vsub.f32 %v456, %v469
        %v472 = vadd.f32 %v470, %v471
        %473 = vst [vmem:[%s291] sm:$0x1] %v472
        %p474 = scmp.eq.s32.totalorder %s30, 1
        // Predicated region
        $region49: #{tpu_custom_call.1} parent=39 // pred_check
          %p475 = pneg %p474
        $region50: #{tpu_custom_call.1} parent=39 // pred_check_branch
          %477 = sbr.rel (%p475) target = $region52
        $region51: #{tpu_custom_call.1} parent=39 // pred_region
          %v478 = vld [vmem:[%s1] sm:$0x1]
          %v479 = vld [vmem:[%s2] sm:$0x1]
          %v480 = vld [vmem:[%s291] sm:$0x1]
          %v481 = vmul.f32 %v478, 0.03125
          %v482 = vmul.f32 %v480, %v481
          %v483 = vadd.f32 %v482, %v479
          %484 = vst [vmem:[%s291] sm:$0x1] %v483
          %v485 = vtanh.pop %v483
          %v486 = vld [vmem:[%s3] sm:$0x1]
          %v487 = vmul.f32 %v485, %v486
          %vm488 = vcmask 1040384
          %v489 = vsel %vm488, %v487, 0.0
          %490 = vadd.xlane.f32.xlu0 %v489
          %v491 = vpop.xlane.xlu0 %490
          %s492 = sld [smem:[#allocation2]]
          %v493 = vstv %s492
          %v494 = vadd.f32 %v491, %v493
          %vm495 = vcmask 0
          %496 = vst.msk [vmem:[%s295] sm:$0x1] %vm495, %v494
        $region52: #{tpu_custom_call.1} parent=39 // pred_fallthru
          _
        %p497 = scmp.lt.s32.totalorder %s29, 1
        %s498 = scalar_select %p497, %s29, 1
        %s499 = scalar_lea.vmem %s5, %s498
        %s500 = sand.u32 %s183, 1
        %s501 = scalar_lea.sflag [#allocation5], %s500
        %s502 = sand.u32 %s183, 1
        %s503 = scalar_lea.vmem [#allocation6], %s502
        // Predicated region
        $region53: #{tpu_custom_call.1} parent=39 // pred_check
          %p504 = pneg %p167
        $region54: #{tpu_custom_call.1} parent=39 // pred_check_branch
          %506 = sbr.rel (%p504) target = $region56
        $region55: #{tpu_custom_call.1} parent=39 // pred_region
          _
        $region56: #{tpu_custom_call.1} parent=39 // pred_fallthru
          _
        // Predicated region
        $region57: #{tpu_custom_call.1} parent=39 // pred_check
          %p507 = pneg %p193
        $region58: #{tpu_custom_call.1} parent=39 // pred_check_branch
          %509 = sbr.rel (%p507) target = $region60
        $region59: #{tpu_custom_call.1} parent=39 // pred_region
          %s511 = ssub.s32 16, 16
          %512 = vsyncadd %s501, %s511
          %s513 = smul.addr %s29, 16
          %s514 = scalar_lea.hbm %s6, %s513
          %s516 = sshll.u32 %s503, 4
          %s517 = int_to_ptr.vmem [resolvable:$true] %s516
          %519 = dma.vmem_to_hbm [thread:$0]  %s517, 16, %s514, %s501
        $region60: #{tpu_custom_call.1} parent=39 // pred_fallthru
          _
      $region40: #{tpu_custom_call.1} parent=5 // pred_fallthru
        _
      %p520 = scmp.le.s32.totalorder 2, %s20
      // Predicated region
      $region61: #{tpu_custom_call.1} parent=5 // pred_check
        %p521 = pneg %p520
      $region62: #{tpu_custom_call.1} parent=5 // pred_check_branch
        %523 = sbr.rel (%p521) target = $region64
      $region63: #{tpu_custom_call.1} parent=5 // pred_region
        %s524 = ssub.s32 %s20, 2
        // Predicated region
        $region65: #{tpu_custom_call.1} parent=63 // pred_check
          %p525 = pneg %p173
        $region66: #{tpu_custom_call.1} parent=63 // pred_check_branch
          %527 = sbr.rel (%p525) target = $region68
        $region67: #{tpu_custom_call.1} parent=63 // pred_region
          %p528 = scmp.lt.s32.totalorder %s31, 1
          %s529 = scalar_select %p528, %s31, 1
          %s530 = scalar_lea.vmem %s5, %s529
        $region68: #{tpu_custom_call.1} parent=63 // pred_fallthru
          _
        // Predicated region
        $region69: #{tpu_custom_call.1} parent=63 // pred_check
          %p531 = pneg %p199
        $region70: #{tpu_custom_call.1} parent=63 // pred_check_branch
          %533 = sbr.rel (%p531) target = $region72
        $region71: #{tpu_custom_call.1} parent=63 // pred_region
          %s534 = sand.u32 %s184, 1
          %s535 = scalar_lea.sflag [#allocation5], %s534
          %s536 = sand.u32 %s184, 1
          %s537 = scalar_lea.vmem [#allocation6], %s536
          %538 = dma.done %s535, 16
        $region72: #{tpu_custom_call.1} parent=63 // pred_fallthru
          _
      $region64: #{tpu_custom_call.1} parent=5 // pred_fallthru
        _
    $region6: #{tpu_custom_call.1} parent=1 // loop_footer
      %s24 = sadd.s32 1, %s20
    $region7: #{tpu_custom_call.1} parent=1 // loop_footer_branch
      %19 = sbr.rel target = $region3
    $region8: #{tpu_custom_call.1} parent=1 // loop_exit
      _
    %539 = vsyncpa [#allocation4], 1
    %s540 = scalar_lea.sflag [#allocation4], 1
    %541 = vsyncpa %s540, 1
    %542 = vsyncpa [#allocation5], 1
    %s543 = scalar_lea.sflag [#allocation5], 1
    %544 = vsyncpa %s543, 1

</llo_original>
